<compile_context>
chip_gen: v6e
topology: v6e:2x2x1
jax: 0.10.0
libtpu: 0.0.40
codegen_flags: <defaults>
</compile_context>

<pallas_src>
import math

import jax
import jax.numpy as jnp
from jax import lax
from jax.experimental import pallas as pl
from jax.experimental.pallas import tpu as pltpu


def _dot_nt(x_tile, w_tile):
    # x_tile: (tm, tk), w_tile: (tn, tk)  ->  (tm, tn), contraction over the last dims.
    return lax.dot_general(
        x_tile,
        w_tile,
        dimension_numbers=(((1,), (1,)), ((), ())),
        preferred_element_type=jnp.float32,
    )


def _cpl_kernel_bias(x_ref, w_ref, b_ref, o_ref, acc_ref):
    k = pl.program_id(2)
    prod = _dot_nt(x_ref[...], w_ref[...])

    @pl.when(k == 0)
    def _init():
        # Fold the bias into the first K step: no separate zeros+add init pass.
        acc_ref[...] = prod + b_ref[...].astype(jnp.float32)

    @pl.when(k > 0)
    def _accum():
        acc_ref[...] += prod

    @pl.when(k == pl.num_programs(2) - 1)
    def _store():
        o_ref[...] = acc_ref[...].astype(o_ref.dtype)


def _cpl_kernel_nobias(x_ref, w_ref, o_ref, acc_ref):
    k = pl.program_id(2)
    prod = _dot_nt(x_ref[...], w_ref[...])

    @pl.when(k == 0)
    def _init():
        acc_ref[...] = prod

    @pl.when(k > 0)
    def _accum():
        acc_ref[...] += prod

    @pl.when(k == pl.num_programs(2) - 1)
    def _store():
        o_ref[...] = acc_ref[...].astype(o_ref.dtype)


def _round_up(x, m):
    return ((x + m - 1) // m) * m


def _sublane_multiple(dtype):
    # Sub-32-bit dtypes pack 2/4 rows per sublane: 8 (f32), 16 (bf16), 32 (int8/fp8).
    return max(8, 32 // jnp.dtype(dtype).itemsize)


def _vmem_cap_bytes():
    try:
        return int(pltpu.get_tpu_info().vmem_capacity_bytes)
    except Exception:
        # Conservative fallback: the smallest per-core VMEM of supported chips (v7x).
        return 64 * 1024 * 1024


def column_parallel_linear(
    x,
    weight,
    bias=None,
    *,
    world_size,
    gather_output=True,
    tm=None,
    tn=None,
    tk=None,
):
    """Forward of ColumnParallelLinear.

    x:      [..., in_features]
    weight: [out_features, in_features]  (out_features % world_size == 0)
    bias:   [out_features] or None
    """
    out_features, in_features = weight.shape
    assert out_features % world_size == 0, "out_features must be divisible by world_size"
    n_local = out_features // world_size

    if not gather_output:
        # Only the local (rank-0 in this single-device simulation) shard is computed —
        # no wasted compute on shards that would be discarded.
        weight = weight[:n_local]
        bias = bias[:n_local] if bias is not None else None
        out_features = n_local
        world_size = 1

    batch_dims = x.shape[:-1]
    m = math.prod(batch_dims) if batch_dims else 1
    x2d = x.reshape(m, in_features)

    x_item = jnp.dtype(x.dtype).itemsize
    w_item = jnp.dtype(weight.dtype).itemsize
    sub_m = _sublane_multiple(x.dtype)

    # Default tiles: big enough to be compute-bound on all generations, dtype-aware.
    if tm is None:
        tm = 512
    if tn is None:
        tn = 512 if x_item >= 4 else 1024
    if tk is None:
        tk = 512 if x_item >= 4 else 1024

    # Clamp / align tiles for small shapes (sublane multiple on M, 128 lanes on N/K).
    tm_ = min(tm, _round_up(m, sub_m))
    tk_ = min(tk, _round_up(in_features, 128))
    tn_ = min(tn, _round_up(n_local, 128))

    m_pad = _round_up(m, tm_)
    k_pad = _round_up(in_features, tk_)
    nl_pad = _round_up(n_local, tn_)
    n_pad = world_size * nl_pad

    # Zero-pad X in M / K (zeros contribute nothing to the contraction).
    if (m_pad, k_pad) != (m, in_features):
        x2d = jnp.pad(x2d, ((0, m_pad - m), (0, k_pad - in_features)))

    # Weight stays [N, K]; contiguous rank slabs mean the aligned case is zero-copy.
    # Only unaligned shapes get a per-rank zero pad (sliced off after the matmul).
    if (nl_pad, k_pad) != (n_local, in_features):
        w3 = weight.reshape(world_size, n_local, in_features)
        w3 = jnp.pad(w3, ((0, 0), (0, nl_pad - n_local), (0, k_pad - in_features)))
        w2d = w3.reshape(n_pad, k_pad)
    else:
        w2d = weight  # (n_pad, k_pad) already

    has_bias = bias is not None
    if has_bias:
        if nl_pad != n_local:
            b2 = bias.reshape(world_size, n_local)
            b2 = jnp.pad(b2, ((0, 0), (0, nl_pad - n_local)))
            b2 = b2.reshape(1, n_pad)
        else:
            b2 = bias.reshape(1, n_pad)

    m_tiles = m_pad // tm_
    n_tiles = n_pad // tn_
    k_tiles = k_pad // tk_

    # Lead the grid with the largest independent axis (better 2-TC split on v7x;
    # harmless on single-TC v5e/v6e).  K stays innermost ("arbitrary").
    if n_tiles >= m_tiles:
        grid = (n_tiles, m_tiles, k_tiles)
        x_spec = pl.BlockSpec((tm_, tk_), lambda j, i, k: (i, k))
        w_spec = pl.BlockSpec((tn_, tk_), lambda j, i, k: (j, k))
        b_spec = pl.BlockSpec((1, tn_), lambda j, i, k: (0, j))
        o_spec = pl.BlockSpec((tm_, tn_), lambda j, i, k: (i, j))
    else:
        grid = (m_tiles, n_tiles, k_tiles)
        x_spec = pl.BlockSpec((tm_, tk_), lambda i, j, k: (i, k))
        w_spec = pl.BlockSpec((tn_, tk_), lambda i, j, k: (j, k))
        b_spec = pl.BlockSpec((1, tn_), lambda i, j, k: (0, j))
        o_spec = pl.BlockSpec((tm_, tn_), lambda i, j, k: (i, j))

    # Generation-aware VMEM budget: actual double-buffered tile footprint + headroom,
    # capped at 3/4 of physical per-core VMEM (96 MiB on v5e/v6e, 48 MiB on v7x).
    tile_bytes = (
        2 * tm_ * tk_ * x_item          # x double buffer
        + 2 * tn_ * tk_ * w_item        # weight double buffer
        + 2 * tm_ * tn_ * x_item        # output double buffer
        + tm_ * tn_ * 4                 # f32 accumulator
        + (2 * tn_ * w_item if has_bias else 0)
    )
    vmem_cap = _vmem_cap_bytes()
    vmem_limit = min(max(2 * tile_bytes, 48 * 1024 * 1024), (vmem_cap * 3) // 4)
    vmem_limit = max(vmem_limit, tile_bytes + (8 << 20))

    cost = pl.CostEstimate(
        flops=2 * m * in_features * out_features,
        transcendentals=0,
        bytes_accessed=(
            m * in_features * x_item
            + out_features * in_features * w_item
            + m * out_features * x_item
        ),
    )

    if has_bias:
        kernel = _cpl_kernel_bias
        in_specs = [x_spec, w_spec, b_spec]
        operands = (x2d, w2d, b2)
    else:
        kernel = _cpl_kernel_nobias
        in_specs = [x_spec, w_spec]
        operands = (x2d, w2d)

    out_padded = pl.pallas_call(
        kernel,
        out_shape=jax.ShapeDtypeStruct((m_pad, n_pad), x.dtype),
        grid_spec=pltpu.PrefetchScalarGridSpec(
            num_scalar_prefetch=0,
            grid=grid,
            in_specs=in_specs,
            out_specs=o_spec,
            scratch_shapes=[pltpu.VMEM((tm_, tn_), jnp.float32)],
        ),
        compiler_params=pltpu.CompilerParams(
            # M-tile / N-tile axes are independent -> megacore-parallel on v7x;
            # K is the accumulation axis -> must stay sequential ("arbitrary").
            dimension_semantics=("parallel", "parallel", "arbitrary"),
            vmem_limit_bytes=int(vmem_limit),
        ),
        cost_estimate=cost,
    )(*operands)

    # Strip padding (no-op on aligned shapes).
    if m_pad == m and nl_pad == n_local:
        y2d = out_padded
    elif nl_pad == n_local:
        y2d = out_padded[:m]
    else:
        y2d = (
            out_padded[:m]
            .reshape(m, world_size, nl_pad)[:, :, :n_local]
            .reshape(m, out_features)
        )

    return y2d.reshape(*batch_dims, out_features)


if __name__ == "__main__":
    key = jax.random.PRNGKey(0)
    k_x, k_w, k_b, k_x2, k_w2, k_b2 = jax.random.split(key, 6)

    # ---- Case 1: lane-dense shapes (zero-copy weight path), gather_output=True ----
    batch, seq, in_features, out_features = 2, 8, 128, 256
    world_size = 2
    x = jax.random.normal(k_x, (batch, seq, in_features), dtype=jnp.float32)
    weight = jax.random.normal(k_w, (out_features, in_features), dtype=jnp.float32) * 0.05
    bias = jax.random.normal(k_b, (out_features,), dtype=jnp.float32) * 0.05

    y = column_parallel_linear(x, weight, bias, world_size=world_size, gather_output=True)
    y = jax.block_until_ready(y)
    y_ref = x @ weight.T + bias
    assert y.shape == (batch, seq, out_features)
    assert jnp.allclose(y, y_ref, atol=1e-4, rtol=1e-4), "mismatch (gathered, aligned)"

    # ---- Case 2: small / unaligned shapes (padding path), with and without gather ----
    in2, out2 = 32, 64
    x2 = jax.random.normal(k_x2, (batch, seq, in2), dtype=jnp.float32)
    w2 = jax.random.normal(k_w2, (out2, in2), dtype=jnp.float32) * 0.05
    b2 = jax.random.normal(k_b2, (out2,), dtype=jnp.float32) * 0.05

    y2 = column_parallel_linear(x2, w2, b2, world_size=world_size, gather_output=True)
    y2 = jax.block_until_ready(y2)
    y2_ref = x2 @ w2.T + b2
    assert y2.shape == (batch, seq, out2)
    assert jnp.allclose(y2, y2_ref, atol=1e-4, rtol=1e-4), "mismatch (gathered, padded)"

    n_local = out2 // world_size
    y3 = column_parallel_linear(x2, w2, b2, world_size=world_size, gather_output=False)
    y3 = jax.block_until_ready(y3)
    y3_ref = x2 @ w2[:n_local].T + b2[:n_local]
    assert y3.shape == (batch, seq, n_local)
    assert jnp.allclose(y3, y3_ref, atol=1e-4, rtol=1e-4), "mismatch (local shard)"

    # No-bias variant.
    y4 = column_parallel_linear(x2, w2, None, world_size=world_size, gather_output=True)
    y4 = jax.block_until_ready(y4)
    assert jnp.allclose(y4, x2 @ w2.T, atol=1e-4, rtol=1e-4), "mismatch (no bias)"

    # bf16 variant (dtype-aware sublane rounding / tile defaults).
    xb = x.astype(jnp.bfloat16)
    wb = weight.astype(jnp.bfloat16)
    bb = bias.astype(jnp.bfloat16)
    y5 = column_parallel_linear(xb, wb, bb, world_size=world_size, gather_output=True)
    y5 = jax.block_until_ready(y5)
    y5_ref = (xb.astype(jnp.float32) @ wb.astype(jnp.float32).T) + bb.astype(jnp.float32)
    assert jnp.allclose(y5.astype(jnp.float32), y5_ref, atol=5e-2, rtol=5e-2), "mismatch (bf16)"

    print("KERNEL_OK")
</pallas_src>

<mosaic_0001>
module attributes {stable_mosaic.version = 11 : i64} {
  func.func @_cpl_kernel_bias(%arg0: i32, %arg1: i32, %arg2: i32, %arg3: memref<16x128xf32, #tpu.memory_space<vmem>>, %arg4: memref<128x128xf32, #tpu.memory_space<vmem>>, %arg5: memref<1x128xf32, #tpu.memory_space<vmem>>, %arg6: memref<16x128xf32, #tpu.memory_space<vmem>>, %arg7: memref<16x128xf32, #tpu.memory_space<vmem>>) attributes {dimension_semantics = [#tpu.dimension_semantics<parallel>, #tpu.dimension_semantics<parallel>, #tpu.dimension_semantics<arbitrary>], iteration_bounds = array<i64: 2, 1, 1>, scalar_prefetch = 0 : i64, scratch_operands = 1 : i64, tpu.core_type = #tpu.core_type<tc>, window_params = [{transform_indices = @transform_0, window_bounds = array<i64: 16, 128>}, {transform_indices = @transform_1, window_bounds = array<i64: 128, 128>}, {transform_indices = @transform_2, window_bounds = array<i64: 1, 128>}, {transform_indices = @transform_3, window_bounds = array<i64: 16, 128>}]} {
    %c0 = arith.constant 0 : index
    %c0_0 = arith.constant 0 : index
    %0 = vector.load %arg3[%c0, %c0_0] : memref<16x128xf32, #tpu.memory_space<vmem>>, vector<16x128xf32>
    %c0_1 = arith.constant 0 : index
    %c0_2 = arith.constant 0 : index
    %1 = vector.load %arg4[%c0_1, %c0_2] : memref<128x128xf32, #tpu.memory_space<vmem>>, vector<128x128xf32>
    %cst = arith.constant dense<0.000000e+00> : vector<16x128xf32>
    %2 = tpu.matmul %0, %1, %cst {dimension_numbers = #tpu.dot_dimension_numbers<[1], [1], [0], [0], [0, 0, 1, 0], [], []>} : vector<16x128xf32>, vector<128x128xf32>, vector<16x128xf32> -> vector<16x128xf32>
    %c0_i32 = arith.constant 0 : i32
    %3 = arith.cmpi eq, %arg2, %c0_i32 : i32
    %4 = arith.extui %3 : i1 to i32
    %c0_i32_3 = arith.constant 0 : i32
    %5 = arith.cmpi ne, %4, %c0_i32_3 : i32
    scf.if %5 {
      %c0_8 = arith.constant 0 : index
      %c0_9 = arith.constant 0 : index
      %12 = vector.load %arg5[%c0_8, %c0_9] : memref<1x128xf32, #tpu.memory_space<vmem>>, vector<1x128xf32>
      %13 = vector.broadcast %12 : vector<1x128xf32> to vector<16x128xf32>
      %14 = arith.addf %2, %13 : vector<16x128xf32>
      %c0_10 = arith.constant 0 : index
      %c0_11 = arith.constant 0 : index
      %15 = vector.load %arg7[%c0_10, %c0_11] : memref<16x128xf32, #tpu.memory_space<vmem>>, vector<16x128xf32>
      tpu.vector_store %arg7[%c0_10, %c0_11], %14 {strides = array<i32>} : memref<16x128xf32, #tpu.memory_space<vmem>>, vector<16x128xf32>,
    } else {
    }
    %c0_i32_4 = arith.constant 0 : i32
    %6 = arith.cmpi sgt, %arg2, %c0_i32_4 : i32
    %7 = arith.extui %6 : i1 to i32
    %c0_i32_5 = arith.constant 0 : i32
    %8 = arith.cmpi ne, %7, %c0_i32_5 : i32
    scf.if %8 {
      %c0_8 = arith.constant 0 : index
      %c0_9 = arith.constant 0 : index
      %12 = vector.load %arg7[%c0_8, %c0_9] : memref<16x128xf32, #tpu.memory_space<vmem>>, vector<16x128xf32>
      %13 = arith.addf %12, %2 : vector<16x128xf32>
      %c0_10 = arith.constant 0 : index
      %c0_11 = arith.constant 0 : index
      %14 = vector.load %arg7[%c0_10, %c0_11] : memref<16x128xf32, #tpu.memory_space<vmem>>, vector<16x128xf32>
      tpu.vector_store %arg7[%c0_10, %c0_11], %13 {strides = array<i32>} : memref<16x128xf32, #tpu.memory_space<vmem>>, vector<16x128xf32>,
    } else {
    }
    %c0_i32_6 = arith.constant 0 : i32
    %9 = arith.cmpi eq, %arg2, %c0_i32_6 : i32
    %10 = arith.extui %9 : i1 to i32
    %c0_i32_7 = arith.constant 0 : i32
    %11 = arith.cmpi ne, %10, %c0_i32_7 : i32
    scf.if %11 {
      %c0_8 = arith.constant 0 : index
      %c0_9 = arith.constant 0 : index
      %12 = vector.load %arg7[%c0_8, %c0_9] : memref<16x128xf32, #tpu.memory_space<vmem>>, vector<16x128xf32>
      %c0_10 = arith.constant 0 : index
      %c0_11 = arith.constant 0 : index
      %13 = vector.load %arg6[%c0_10, %c0_11] : memref<16x128xf32, #tpu.memory_space<vmem>>, vector<16x128xf32>
      tpu.vector_store %arg6[%c0_10, %c0_11], %12 {strides = array<i32>} : memref<16x128xf32, #tpu.memory_space<vmem>>, vector<16x128xf32>,
    } else {
    }
    return
  }
  func.func @transform_0(%arg0: i32, %arg1: i32, %arg2: i32) -> (i32, i32) {
    %c0_i32 = arith.constant 0 : i32
    return %arg1, %arg2 : i32, i32
  }
  func.func @transform_1(%arg0: i32, %arg1: i32, %arg2: i32) -> (i32, i32) {
    %c0_i32 = arith.constant 0 : i32
    return %arg0, %arg2 : i32, i32
  }
  func.func @transform_2(%arg0: i32, %arg1: i32, %arg2: i32) -> (i32, i32) {
    %c0_i32 = arith.constant 0 : i32
    %c0_i32_0 = arith.constant 0 : i32
    return %c0_i32, %arg0 : i32, i32
  }
  func.func @transform_3(%arg0: i32, %arg1: i32, %arg2: i32) -> (i32, i32) {
    %c0_i32 = arith.constant 0 : i32
    return %arg1, %arg0 : i32, i32
  }
}

</mosaic_0001>

<llo_original>
// kernel: tpu_custom_call.1
$region0: #{tpu_custom_call.1}
  #allocation0 [shape = 'u32[]', space=smem, size = 0x4, offset = 0x4, fixed_abs, tag = 'smem constant byte address 0x4 - core index']
  #allocation1 [shape = 'u32[144,128]{1,0:T(1,128)}', space=vmem, size = 0x12000, scoped, tag = 'internal scratch']
  #allocation2 [shape = 'f32[16,128]{1,0:T(8,128)}', space=vmem, size = 0x2000, scoped, tag = 'scratch operand']
  %s0 = inlined_call_operand.hbm [shape: f32[16,128], index: 0, kind: input, shape index: {}]
  %s1 = inlined_call_operand.hbm [shape: f32[256,128], index: 1, kind: input, shape index: {}]
  %s2 = inlined_call_operand.vmem [shape: f32[1,256], index: 2, kind: input, shape index: {}]
  %s3 = inlined_call_operand.hbm [shape: f32[16,256], index: 3, kind: output, shape index: {}]
  %s4 = sld [smem:[#allocation0]]
  $region65: #{tpu_custom_call.1} parent=0
    _
  %s6 = ssub.s32 1, %s4
  %s7 = scalar_select 0, %s6, %s4
  $region1: #{tpu_custom_call.1} parent=0
    #allocation3 [shape = 'u8[8192]{0}', space=vmem, size = 0x2000, scoped, tag = 'input window, operand 0, single buffered']
    #allocation4 [shape = 's32[2]{0}', space=sflag, size = 0x8, scoped, tag = 'scoped memory for tpu_custom_call.1']
    #allocation5 [shape = 's32[2]{0}', space=sflag, size = 0x8, scoped, tag = 'scoped memory for tpu_custom_call.1']
    #allocation6 [shape = 'u8[131072]{0}', space=vmem, size = 0x20000, scoped, tag = 'input window, operand 1']
    #allocation7 [shape = 's32[2]{0}', space=sflag, size = 0x8, scoped, tag = 'scoped memory for tpu_custom_call.1']
    #allocation8 [shape = 'u8[16384]{0}', space=vmem, size = 0x4000, scoped, tag = 'output window, operand 0']
    %8 = vsyncpa [#allocation4], 0
    %9 = vsyncpa [#allocation7], 0
    %s10 = scalar_lea.sflag [#allocation7], 1
    %11 = vsyncpa %s10, 0
    %12 = vsyncpa [#allocation5], 0
    %s13 = scalar_lea.sflag [#allocation5], 1
    %14 = vsyncpa %s13, 0
    loop: start=0, step=1, limit=4
    $region2: #{tpu_custom_call.1} parent=1 // loop_pre_header
      _
    $region3: #{tpu_custom_call.1} parent=1 // loop_header
      %s16 = sphi 0, %s20
      %p17 = scmp.ge.s32.totalorder %s16, 4
      %s23 = sphi 0, %s42
      %s24 = sphi 0, %s38
      %s25 = sphi 0, %s34
      %s26 = sphi 0, %s23
      %s27 = sphi 0, %s24
      %s28 = sphi 0, %s25
      %s29 = sphi 0, %s26
      %s30 = sphi 0, %s27
      %s31 = sphi 0, %s28
      %s47 = sphi 0, %s49
      %s50 = sphi 0, %s47
      %s51 = sphi 0, %s50
      %s67 = sphi 0, %s51
      %s75 = sphi 0, %s77
      %s78 = sphi 0, %s75
      %s79 = sphi 0, %s78
      %s95 = sphi 0, %s79
      %s101 = sphi 0, %s103
      %s104 = sphi 0, %s101
      %s105 = sphi 0, %s104
      %s121 = sphi 0, %s105
      %s129 = sphi 0, %s131
      %s132 = sphi 0, %s129
      %s133 = sphi 0, %s132
      %s149 = sphi 0, %s133
    $region4: #{tpu_custom_call.1} parent=1 // loop_header_branch
      %19 = sbr.rel (%p17) target = $region8
    $region5: #{tpu_custom_call.1} parent=1 // loop_body
      %s21 = ssub.s32 %s16, 1
      %s22 = ssub.s32 %s16, 2
      %s32 = sadd.s32 1, %s25
      %p33 = scmp.ge.s32.totalorder %s32, 1
      %s34 = scalar_select %p33, 0, %s32
      %s35 = sadd.s32 1, %s24
      %s36 = scalar_select %p33, %s35, %s24
      %p37 = scmp.ge.s32.totalorder %s36, 1
      %s38 = scalar_select %p37, 0, %s36
      %s39 = sadd.s32 1, %s23
      %s40 = scalar_select %p37, %s39, %s23
      %p41 = scmp.ge.s32.totalorder %s40, 2
      %s42 = scalar_select %p41, 0, %s40
      %s43 = ssub.s32 %s24, %s38
      %s44 = ssub.s32 %s25, %s34
      %s45 = sor.u32 %s43, %s44
      %p46 = scmp.eq.s32.totalorder %s45, 0
      %s48 = sadd.s32 %s47, 1
      %s49 = scalar_select %p46, %s47, %s48
      %p52 = pneg %p46
      %p53 = scmp.eq.s32.totalorder %s16, 1
      %p54 = por %p52, %p53
      %p55 = scmp.ne.s32.totalorder %s47, %s50
      %p56 = scmp.eq.s32.totalorder %s16, 0
      %p57 = por %p55, %p56
      %p58 = scmp.ne.s32.totalorder %s47, %s50
      %p59 = scmp.eq.s32.totalorder %s21, 1
      %p60 = por %p58, %p59
      %p61 = scmp.ne.s32.totalorder %s50, %s51
      %p62 = scmp.eq.s32.totalorder %s21, 0
      %p63 = por %p61, %p62
      %p64 = scmp.ne.s32.totalorder %s50, %s51
      %p65 = scmp.eq.s32.totalorder %s22, 1
      %p66 = por %p64, %p65
      %p68 = scmp.ne.s32.totalorder %s51, %s67
      %p69 = scmp.eq.s32.totalorder %s22, 0
      %p70 = por %p68, %p69
      %s71 = ssub.s32 %s23, %s42
      %s72 = ssub.s32 %s25, %s34
      %s73 = sor.u32 %s71, %s72
      %p74 = scmp.eq.s32.totalorder %s73, 0
      %s76 = sadd.s32 %s75, 1
      %s77 = scalar_select %p74, %s75, %s76
      %p80 = pneg %p74
      %p81 = scmp.eq.s32.totalorder %s16, 1
      %p82 = por %p80, %p81
      %p83 = scmp.ne.s32.totalorder %s75, %s78
      %p84 = scmp.eq.s32.totalorder %s16, 0
      %p85 = por %p83, %p84
      %p86 = scmp.ne.s32.totalorder %s75, %s78
      %p87 = scmp.eq.s32.totalorder %s21, 1
      %p88 = por %p86, %p87
      %p89 = scmp.ne.s32.totalorder %s78, %s79
      %p90 = scmp.eq.s32.totalorder %s21, 0
      %p91 = por %p89, %p90
      %p92 = scmp.ne.s32.totalorder %s78, %s79
      %p93 = scmp.eq.s32.totalorder %s22, 1
      %p94 = por %p92, %p93
      %p96 = scmp.ne.s32.totalorder %s79, %s95
      %p97 = scmp.eq.s32.totalorder %s22, 0
      %p98 = por %p96, %p97
      %s99 = ssub.s32 %s23, %s42
      %p100 = scmp.eq.s32.totalorder %s99, 0
      %s102 = sadd.s32 %s101, 1
      %s103 = scalar_select %p100, %s101, %s102
      %p106 = pneg %p100
      %p107 = scmp.eq.s32.totalorder %s16, 1
      %p108 = por %p106, %p107
      %p109 = scmp.ne.s32.totalorder %s101, %s104
      %p110 = scmp.eq.s32.totalorder %s16, 0
      %p111 = por %p109, %p110
      %p112 = scmp.ne.s32.totalorder %s101, %s104
      %p113 = scmp.eq.s32.totalorder %s21, 1
      %p114 = por %p112, %p113
      %p115 = scmp.ne.s32.totalorder %s104, %s105
      %p116 = scmp.eq.s32.totalorder %s21, 0
      %p117 = por %p115, %p116
      %p118 = scmp.ne.s32.totalorder %s104, %s105
      %p119 = scmp.eq.s32.totalorder %s22, 1
      %p120 = por %p118, %p119
      %p122 = scmp.ne.s32.totalorder %s105, %s121
      %p123 = scmp.eq.s32.totalorder %s22, 0
      %p124 = por %p122, %p123
      %s125 = ssub.s32 %s24, %s38
      %s126 = ssub.s32 %s23, %s42
      %s127 = sor.u32 %s125, %s126
      %p128 = scmp.eq.s32.totalorder %s127, 0
      %s130 = sadd.s32 %s129, 1
      %s131 = scalar_select %p128, %s129, %s130
      %p134 = pneg %p128
      %p135 = scmp.eq.s32.totalorder %s16, 1
      %p136 = por %p134, %p135
      %p137 = scmp.ne.s32.totalorder %s129, %s132
      %p138 = scmp.eq.s32.totalorder %s16, 0
      %p139 = por %p137, %p138
      %p140 = scmp.ne.s32.totalorder %s129, %s132
      %p141 = scmp.eq.s32.totalorder %s21, 1
      %p142 = por %p140, %p141
      %p143 = scmp.ne.s32.totalorder %s132, %s133
      %p144 = scmp.eq.s32.totalorder %s21, 0
      %p145 = por %p143, %p144
      %p146 = scmp.ne.s32.totalorder %s132, %s133
      %p147 = scmp.eq.s32.totalorder %s22, 1
      %p148 = por %p146, %p147
      %p150 = scmp.ne.s32.totalorder %s133, %s149
      %p151 = scmp.eq.s32.totalorder %s22, 0
      %p152 = por %p150, %p151
      %p153 = scmp.le.s32.totalorder 1, %s16
      %p154 = scmp.lt.s32.totalorder %s16, 3
      %p155 = pnand %p153, %p154
      %p156 = pneg %p155
      // Predicated region
      $region9: #{tpu_custom_call.1} parent=5 // pred_check
        _
      $region10: #{tpu_custom_call.1} parent=5 // pred_check_branch
        %158 = sbr.rel (%p155) target = $region12
      $region11: #{tpu_custom_call.1} parent=5 // pred_region
        %s159 = ssub.s32 %s16, 1
        // Predicated region
        $region13: #{tpu_custom_call.1} parent=11 // pred_check
          %p160 = pneg %p63
        $region14: #{tpu_custom_call.1} parent=11 // pred_check_branch
          %162 = sbr.rel (%p160) target = $region16
        $region15: #{tpu_custom_call.1} parent=11 // pred_region
          %s163 = smul.u32 2, %s27
          %s165 = ssub.s32 256, 256
          %166 = vsyncadd [#allocation4], %s165
          %s167 = sadd.s32 %s28, %s163
          %s168 = smul.addr %s167, 128
          %s169 = scalar_lea.hbm %s0, %s168
          %s170 = sshll.u32 [#allocation3], 4
          %s171 = int_to_ptr.vmem [resolvable:$true] %s170
          %176 = dma.hbm_to_vmem [thread:$0]  %s169, 256, %s171, [#allocation4], 128, 128, 8
        $region16: #{tpu_custom_call.1} parent=11 // pred_fallthru
          _
      $region12: #{tpu_custom_call.1} parent=5 // pred_fallthru
        _
      %p177 = scmp.lt.s32.totalorder %s16, 2
      // Predicated region
      $region17: #{tpu_custom_call.1} parent=5 // pred_check
        %p178 = pneg %p177
      $region18: #{tpu_custom_call.1} parent=5 // pred_check_branch
        %180 = sbr.rel (%p178) target = $region20
      $region19: #{tpu_custom_call.1} parent=5 // pred_region
        // Predicated region
        $region21: #{tpu_custom_call.1} parent=19 // pred_check
          %p181 = pneg %p85
        $region22: #{tpu_custom_call.1} parent=19 // pred_check_branch
          %183 = sbr.rel (%p181) target = $region24
        $region23: #{tpu_custom_call.1} parent=19 // pred_region
          %s184 = sand.u32 %s75, 1
          %s185 = scalar_lea.sflag [#allocation7], %s184
          %s186 = sand.u32 %s75, 1
          %s187 = smul.addr %s186, 128
          %s188 = scalar_lea.vmem [#allocation6], %s187
          %s189 = smul.u32 16, %s23
          %s191 = ssub.s32 2048, 2048
          %192 = vsyncadd %s185, %s191
          %s193 = sadd.s32 %s25, %s189
          %s194 = smul.addr %s193, 128
          %s195 = scalar_lea.hbm %s1, %s194
          %s196 = sshll.u32 %s188, 4
          %s197 = int_to_ptr.vmem [resolvable:$true] %s196
          %202 = dma.hbm_to_vmem [thread:$0]  %s195, 2048, %s197, %s185, 128, 128, 8
        $region24: #{tpu_custom_call.1} parent=19 // pred_fallthru
          _
        // Predicated region
        $region25: #{tpu_custom_call.1} parent=19 // pred_check
          %p203 = pneg %p111
        $region26: #{tpu_custom_call.1} parent=19 // pred_check_branch
          %205 = sbr.rel (%p203) target = $region28
        $region27: #{tpu_custom_call.1} parent=19 // pred_region
          %p206 = scmp.lt.s32.totalorder %s23, 1
          %s207 = scalar_select %p206, %s23, 1
          %s208 = scalar_lea.vmem %s2, %s207
        $region28: #{tpu_custom_call.1} parent=19 // pred_fallthru
          _
      $region20: #{tpu_custom_call.1} parent=5 // pred_fallthru
        _
      %p209 = scmp.le.s32.totalorder 1, %s16
      %p210 = scmp.lt.s32.totalorder %s16, 3
      %p211 = pnand %p209, %p210
      %p212 = pneg %p211
      // Predicated region
      $region29: #{tpu_custom_call.1} parent=5 // pred_check
        _
      $region30: #{tpu_custom_call.1} parent=5 // pred_check_branch
        %214 = sbr.rel (%p211) target = $region32
      $region31: #{tpu_custom_call.1} parent=5 // pred_region
        %s215 = ssub.s32 %s16, 1
        // Predicated region
        $region33: #{tpu_custom_call.1} parent=31 // pred_check
          %p216 = pneg %p63
        $region34: #{tpu_custom_call.1} parent=31 // pred_check_branch
          %218 = sbr.rel (%p216) target = $region36
        $region35: #{tpu_custom_call.1} parent=31 // pred_region
          %219 = dma.done [#allocation4], 256
        $region36: #{tpu_custom_call.1} parent=31 // pred_fallthru
          _
        %s220 = sand.u32 %s78, 1
        %s221 = scalar_lea.sflag [#allocation7], %s220
        %s222 = sand.u32 %s78, 1
        %s223 = smul.addr %s222, 128
        %s224 = scalar_lea.vmem [#allocation6], %s223
        // Predicated region
        $region37: #{tpu_custom_call.1} parent=31 // pred_check
          %p225 = pneg %p91
        $region38: #{tpu_custom_call.1} parent=31 // pred_check_branch
          %227 = sbr.rel (%p225) target = $region40
        $region39: #{tpu_custom_call.1} parent=31 // pred_region
          %228 = dma.done %s221, 2048
        $region40: #{tpu_custom_call.1} parent=31 // pred_fallthru
          _
        %p229 = pneg %p63
        %p230 = pneg %p60
        %s231 = sand.u32 %s78, 1
        %s232 = scalar_lea.sflag [#allocation7], %s231
        %s233 = sand.u32 %s78, 1
        %s234 = smul.addr %s233, 128
        %s235 = scalar_lea.vmem [#allocation6], %s234
        %p236 = pneg %p91
        %p237 = pneg %p88
        %p238 = scmp.lt.s32.totalorder %s26, 1
        %s239 = scalar_select %p238, %s26, 1
        %s240 = scalar_lea.vmem %s2, %s239
        %p241 = pneg %p117
        %p242 = pneg %p114
        %p243 = pneg %p145
        %p244 = pneg %p142
        %s245 = sand.u32 %s132, 1
        %s246 = scalar_lea.sflag [#allocation5], %s245
        %s247 = sand.u32 %s132, 1
        %s248 = smul.addr %s247, 16
        %s249 = scalar_lea.vmem [#allocation8], %s248
        %s250 = smul.u32 2, %s27
        %s251 = smul.u32 16, %s26
        %p252 = scmp.lt.s32.totalorder %s26, 1
        %s253 = scalar_select %p252, %s26, 1
        %s254 = scalar_lea.vmem %s2, %s253
        %s255 = smul.u32 2, %s27
        %v256 = vld [vmem:[#allocation3] sm:$0xff]
        %v257 = vld [vmem:[#allocation3 + $0x8] sm:$0xff]
        %v258 = vld [vmem:[%s224] sm:$0xff]
        %v259 = vld [vmem:[%s224 + $0x8] sm:$0xff]
        %v260 = vld [vmem:[%s224 + $0x10] sm:$0xff]
        %v261 = vld [vmem:[%s224 + $0x18] sm:$0xff]
        %v262 = vld [vmem:[%s224 + $0x20] sm:$0xff]
        %v263 = vld [vmem:[%s224 + $0x28] sm:$0xff]
        %v264 = vld [vmem:[%s224 + $0x30] sm:$0xff]
        %v265 = vld [vmem:[%s224 + $0x38] sm:$0xff]
        %v266 = vld [vmem:[%s224 + $0x40] sm:$0xff]
        %v267 = vld [vmem:[%s224 + $0x48] sm:$0xff]
        %v268 = vld [vmem:[%s224 + $0x50] sm:$0xff]
        %v269 = vld [vmem:[%s224 + $0x58] sm:$0xff]
        %v270 = vld [vmem:[%s224 + $0x60] sm:$0xff]
        %v271 = vld [vmem:[%s224 + $0x68] sm:$0xff]
        %v272 = vld [vmem:[%s224 + $0x70] sm:$0xff]
        %v273 = vld [vmem:[%s224 + $0x78] sm:$0xff]
        %274 = vmatprep.subr.mxu0 0.0
        %275 = vmatpush1.xpose.msra.mxu0 %v273
        %276 = vmatprep.subr.mxu0 0.0
        %277 = vmatpush1.xpose.msra.mxu0 %v272
        %278 = vmatprep.subr.mxu0 0.0
        %279 = vmatpush1.xpose.msra.mxu0 %v271
        %280 = vmatprep.subr.mxu0 0.0
        %281 = vmatpush1.xpose.msra.mxu0 %v270
        %282 = vmatprep.subr.mxu0 0.0
        %283 = vmatpush1.xpose.msra.mxu0 %v269
        %284 = vmatprep.subr.mxu0 0.0
        %285 = vmatpush1.xpose.msra.mxu0 %v268
        %286 = vmatprep.subr.mxu0 0.0
        %287 = vmatpush1.xpose.msra.mxu0 %v267
        %288 = vmatprep.subr.mxu0 0.0
        %289 = vmatpush1.xpose.msra.mxu0 %v266
        %290 = vmatprep.subr.mxu0 0.0
        %291 = vmatpush1.xpose.msra.mxu0 %v265
        %292 = vmatprep.subr.mxu0 0.0
        %293 = vmatpush1.xpose.msra.mxu0 %v264
        %294 = vmatprep.subr.mxu0 0.0
        %295 = vmatpush1.xpose.msra.mxu0 %v263
        %296 = vmatprep.subr.mxu0 0.0
        %297 = vmatpush1.xpose.msra.mxu0 %v262
        %298 = vmatprep.subr.mxu0 0.0
        %299 = vmatpush1.xpose.msra.mxu0 %v261
        %300 = vmatprep.subr.mxu0 0.0
        %301 = vmatpush1.xpose.msra.mxu0 %v260
        %302 = vmatprep.subr.mxu0 0.0
        %303 = vmatpush1.xpose.msra.mxu0 %v259
        %304 = vmatprep.subr.mxu0 0.0
        %305 = vmatpush1.xpose.msra.mxu0 %v258
        %306 = vmatprep.subr.mxu0 0.0
        %307 = vmatpush2.xpose.msra.mxu0 0.0
        %308 = vmatprep.subr.mxu0 0.0
        %309 = vmatpush2.xpose.msra.mxu0 0.0
        %310 = vmatprep.subr.mxu0 0.0
        %311 = vmatpush2.xpose.msra.mxu0 0.0
        %312 = vmatprep.subr.mxu0 0.0
        %313 = vmatpush2.xpose.msra.mxu0 0.0
        %314 = vmatprep.subr.mxu0 0.0
        %315 = vmatpush2.xpose.msra.mxu0 0.0
        %316 = vmatprep.subr.mxu0 0.0
        %317 = vmatpush2.xpose.msra.mxu0 0.0
        %318 = vmatprep.subr.mxu0 0.0
        %319 = vmatpush2.xpose.msra.mxu0 0.0
        %320 = vmatprep.subr.mxu0 0.0
        %321 = vmatpush2.xpose.msra.mxu0 0.0
        %322 = vmatprep.subr.mxu0 0.0
        %323 = vmatpush2.xpose.msra.mxu0 0.0
        %324 = vmatprep.subr.mxu0 0.0
        %325 = vmatpush2.xpose.msra.mxu0 0.0
        %326 = vmatprep.subr.mxu0 0.0
        %327 = vmatpush2.xpose.msra.mxu0 0.0
        %328 = vmatprep.subr.mxu0 0.0
        %329 = vmatpush2.xpose.msra.mxu0 0.0
        %330 = vmatprep.subr.mxu0 0.0
        %331 = vmatpush2.xpose.msra.mxu0 0.0
        %332 = vmatprep.subr.mxu0 0.0
        %333 = vmatpush2.xpose.msra.mxu0 0.0
        %334 = vmatprep.subr.mxu0 0.0
        %335 = vmatpush2.xpose.msra.mxu0 0.0
        %336 = vmatprep.subr.mxu0 0.0
        %337 = vmatpush2.xpose.msra.mxu0 0.0
        %338 = vmatprep.mubr.f32.mxu0 0.0
        %339 = vmatmul.mubr.f32.gmra.mxu0 %v256
        %v340 = vpop.f32.mrf.mxu0
        %v341 = vadd.f32 0.0, %v340
        %v342 = vpop.f32.mrf.mxu0
        %343 = vmatprep.mubr.f32.mxu0 0.0
        %344 = vmatmul.mubr.f32.gmra.mxu0 %v257
        %v345 = vpop.f32.mrf.mxu0
        %v346 = vadd.f32 0.0, %v345
        %v347 = vpop.f32.mrf.mxu0
        %348 = vdwg.mxu0
        %p349 = scmp.eq.s32.totalorder %s28, 0
        // Predicated region
        $region41: #{tpu_custom_call.1} parent=31 // pred_check
          %p350 = pneg %p349
        $region42: #{tpu_custom_call.1} parent=31 // pred_check_branch
          %352 = sbr.rel (%p350) target = $region44
        $region43: #{tpu_custom_call.1} parent=31 // pred_region
          %v353 = vld [vmem:[%s254] sm:$0x1]
          %v355 = vlaneseq
          %v356 = vshrl.u32 %v355, 7
          %v357 = vsub.s32 0, %v356
          %v358 = vrot.slane %v353, %v357
          %v360 = vadd.f32 %v341, %v358
          %v361 = vadd.f32 %v346, %v358
          %362 = vst [vmem:[#allocation2] sm:$0xff] %v360
          %363 = vst [vmem:[#allocation2 + $0x8] sm:$0xff] %v361
        $region44: #{tpu_custom_call.1} parent=31 // pred_fallthru
          _
        %p364 = scmp.gt.s32.totalorder %s28, 0
        // Predicated region
        $region45: #{tpu_custom_call.1} parent=31 // pred_check
          %p365 = pneg %p364
        $region46: #{tpu_custom_call.1} parent=31 // pred_check_branch
          %367 = sbr.rel (%p365) target = $region48
        $region47: #{tpu_custom_call.1} parent=31 // pred_region
          %v368 = vld [vmem:[#allocation2] sm:$0xff]
          %v369 = vld [vmem:[#allocation2 + $0x8] sm:$0xff]
          %v370 = vadd.f32 %v368, %v341
          %v371 = vadd.f32 %v369, %v346
          %372 = vst [vmem:[#allocation2] sm:$0xff] %v370
          %373 = vst [vmem:[#allocation2 + $0x8] sm:$0xff] %v371
        $region48: #{tpu_custom_call.1} parent=31 // pred_fallthru
          _
        // Predicated region
        $region49: #{tpu_custom_call.1} parent=31 // pred_check
          %p374 = pneg %p349
        $region50: #{tpu_custom_call.1} parent=31 // pred_check_branch
          %376 = sbr.rel (%p374) target = $region52
        $region51: #{tpu_custom_call.1} parent=31 // pred_region
          %v377 = vld [vmem:[#allocation2] sm:$0xff]
          %v378 = vld [vmem:[#allocation2 + $0x8] sm:$0xff]
          %379 = vst [vmem:[%s249] sm:$0xff] %v377
          %380 = vst [vmem:[%s249 + $0x8] sm:$0xff] %v378
        $region52: #{tpu_custom_call.1} parent=31 // pred_fallthru
          _
        %s381 = sand.u32 %s132, 1
        %s382 = scalar_lea.sflag [#allocation5], %s381
        %s383 = sand.u32 %s132, 1
        %s384 = smul.addr %s383, 16
        %s385 = scalar_lea.vmem [#allocation8], %s384
        // Predicated region
        $region53: #{tpu_custom_call.1} parent=31 // pred_check
          %p386 = pneg %p142
        $region54: #{tpu_custom_call.1} parent=31 // pred_check_branch
          %388 = sbr.rel (%p386) target = $region56
        $region55: #{tpu_custom_call.1} parent=31 // pred_region
          %s389 = smul.u32 2, %s27
          %s391 = ssub.s32 256, 256
          %392 = vsyncadd %s382, %s391
          %s393 = smul.addr %s389, 2
          %s394 = sadd.s32 %s26, %s393
          %s395 = smul.addr %s394, 128
          %s396 = scalar_lea.hbm %s3, %s395
          %s397 = sshll.u32 %s385, 4
          %s398 = int_to_ptr.vmem [resolvable:$true] %s397
          %403 = dma.vmem_to_hbm [thread:$0]  %s398, 256, %s396, %s382, 128, 256, 8
        $region56: #{tpu_custom_call.1} parent=31 // pred_fallthru
          _
      $region32: #{tpu_custom_call.1} parent=5 // pred_fallthru
        _
      %p404 = scmp.le.s32.totalorder 2, %s16
      // Predicated region
      $region57: #{tpu_custom_call.1} parent=5 // pred_check
        %p405 = pneg %p404
      $region58: #{tpu_custom_call.1} parent=5 // pred_check_branch
        %407 = sbr.rel (%p405) target = $region60
      $region59: #{tpu_custom_call.1} parent=5 // pred_region
        %s408 = ssub.s32 %s16, 2
        // Predicated region
        $region61: #{tpu_custom_call.1} parent=59 // pred_check
          %p409 = pneg %p148
        $region62: #{tpu_custom_call.1} parent=59 // pred_check_branch
          %411 = sbr.rel (%p409) target = $region64
        $region63: #{tpu_custom_call.1} parent=59 // pred_region
          %s412 = sand.u32 %s133, 1
          %s413 = scalar_lea.sflag [#allocation5], %s412
          %s414 = sand.u32 %s133, 1
          %s415 = smul.addr %s414, 16
          %s416 = scalar_lea.vmem [#allocation8], %s415
          %417 = dma.done %s413, 256
        $region64: #{tpu_custom_call.1} parent=59 // pred_fallthru
          _
      $region60: #{tpu_custom_call.1} parent=5 // pred_fallthru
        _
    $region6: #{tpu_custom_call.1} parent=1 // loop_footer
      %s20 = sadd.s32 1, %s16
    $region7: #{tpu_custom_call.1} parent=1 // loop_footer_branch
      %15 = sbr.rel target = $region3
    $region8: #{tpu_custom_call.1} parent=1 // loop_exit
      _
    %418 = vsyncpa [#allocation4], 1
    %s419 = scalar_lea.sflag [#allocation4], 1
    %420 = vsyncpa %s419, 1
    %421 = vsyncpa [#allocation7], 1
    %s422 = scalar_lea.sflag [#allocation7], 1
    %423 = vsyncpa %s422, 1
    %424 = vsyncpa [#allocation5], 1
    %s425 = scalar_lea.sflag [#allocation5], 1
    %426 = vsyncpa %s425, 1

</llo_original>
